<compile_context>
chip_gen: v7x
topology: tpu7x:2x2x1
jax: 0.10.0
libtpu: 0.0.40
codegen_flags: <defaults>
</compile_context>

<pallas_src>
import numpy as np
import jax
import jax.numpy as jnp
from jax.experimental import pallas as pl
from jax.experimental.pallas import tpu as pltpu


def _round_up(x, m):
    return ((x + m - 1) // m) * m


def _cdiv(a, b):
    return -(-a // b)


def encoder_kernel(self_t_ref, neigh_t_ref, w_self_ref, w_neigh_ref, out_ref):
    """One column-tile of nodes.

    self_t_ref  : [D, TN]      self features, transposed (K on sublanes)
    neigh_t_ref : [D, TN]      mean-aggregated neighbor features, transposed
    w_self_ref  : [E_pad, D]   self half of Encoder.weight (VMEM resident)
    w_neigh_ref : [E_pad, D]   neighbor half of Encoder.weight (VMEM resident)
    out_ref     : [E_pad, TN]  relu(W @ combined.T), lane-dense (lane = TN)
    """
    dn = (((1,), (0,)), ((), ()))          # canonical [M, K] x [K, N]
    acc = jax.lax.dot_general(w_self_ref[...], self_t_ref[...], dn,
                              preferred_element_type=jnp.float32)
    acc = acc + jax.lax.dot_general(w_neigh_ref[...], neigh_t_ref[...], dn,
                                    preferred_element_type=jnp.float32)
    out_ref[...] = jnp.maximum(acc, 0.0).astype(out_ref.dtype)


def _pick_tile_n(n, feat_dim, e_pad, in_bytes, out_bytes):
    """Budget-driven column tile (multiple of 128) and VMEM limit."""
    try:
        vmem_cap = int(pltpu.get_tpu_info().vmem_capacity_bytes)
    except Exception:
        vmem_cap = 64 * 1024 * 1024            # conservative (v7x-sized) fallback
    budget = max(32 << 20, min(int(vmem_cap * 0.7), 112 << 20))
    # Resident weights (still double-buffered by the pipeline even though their
    # block index is constant).
    # TODO(synk): pipeline_mode=pl.Buffered(1) on the weight specs would drop the
    # unused second buffer; omitted pending support in this JAX version.
    weight_bytes = 2 * 2 * e_pad * feat_dim * in_bytes
    # Per output-column bytes: 2 double-buffered activation inputs + d-b output.
    per_col = 2 * 2 * feat_dim * in_bytes + 2 * e_pad * out_bytes
    tn_max = (budget - weight_bytes) // max(per_col, 1)
    tn_max = max(128, min((tn_max // 128) * 128, 4096))
    num_tiles = _cdiv(n, tn_max)
    if n > 256:
        num_tiles = max(num_tiles, 2)          # >= 2 grid steps: both v7x TCs
    tn = _round_up(_cdiv(n, num_tiles), 128)
    return tn, budget


def encoder_forward(features, weight, nodes, neigh_ids, neigh_coef,
                    *, compute_dtype=jnp.bfloat16):
    """features [num_nodes, D] f32, weight [E, 2D] f32, nodes [N] i32,
    neigh_ids [N, S] i32, neigh_coef [N, S] f32 (1/count for valid slots, 0 pad).
    Returns relu(W @ cat(self, neigh).T) with shape [E, N] (PyTorch layout)."""
    n = int(nodes.shape[0])
    num_nodes, feat_dim = features.shape
    embed_dim, two_d = weight.shape
    assert two_d == 2 * feat_dim
    s = neigh_ids.shape[1]

    # ---- Gathers + mean aggregation stay in the wrapper (XLA fuses them);
    #      only [D, N]-sized activations ever reach the kernel's DMA.
    self_feats = jnp.take(features, nodes, axis=0)                       # [N, D]
    gathered = jnp.take(features, neigh_ids.reshape(-1), axis=0)
    gathered = gathered.reshape(n, s, feat_dim)
    neigh_feats = jnp.einsum('ns,nsd->nd',
                             neigh_coef.astype(jnp.float32),
                             gathered.astype(jnp.float32))               # [N, D] f32 mean
    # Kernel wants K (=D) on sublanes and node index on lanes, so the kernel can
    # write [E, N] directly with lane-dense stores (no wrapper .T of the result).
    self_t = self_feats.T.astype(compute_dtype)                          # [D, N]
    neigh_t = neigh_feats.T.astype(compute_dtype)                        # [D, N]

    # Split weight: avoids an in-kernel concat across a non-128-aligned boundary.
    w_self = weight[:, :feat_dim].astype(compute_dtype)                  # [E, D]
    w_neigh = weight[:, feat_dim:].astype(compute_dtype)                 # [E, D]

    e_pad = _round_up(embed_dim, 8)
    in_bytes = jnp.dtype(compute_dtype).itemsize
    tn, vmem_budget = _pick_tile_n(n, feat_dim, e_pad, in_bytes, 4)
    n_pad = _round_up(n, tn)

    self_t = jnp.pad(self_t, ((0, 0), (0, n_pad - n)))
    neigh_t = jnp.pad(neigh_t, ((0, 0), (0, n_pad - n)))
    w_self = jnp.pad(w_self, ((0, e_pad - embed_dim), (0, 0)))
    w_neigh = jnp.pad(w_neigh, ((0, e_pad - embed_dim), (0, 0)))

    out = pl.pallas_call(
        encoder_kernel,
        out_shape=jax.ShapeDtypeStruct((e_pad, n_pad), jnp.float32),
        grid_spec=pltpu.PrefetchScalarGridSpec(
            num_scalar_prefetch=0,
            grid=(n_pad // tn,),
            in_specs=[
                pl.BlockSpec((feat_dim, tn), lambda i: (0, i)),
                pl.BlockSpec((feat_dim, tn), lambda i: (0, i)),
                pl.BlockSpec((e_pad, feat_dim), lambda i: (0, 0)),   # resident
                pl.BlockSpec((e_pad, feat_dim), lambda i: (0, 0)),   # resident
            ],
            out_specs=pl.BlockSpec((e_pad, tn), lambda i: (0, i)),
        ),
        compiler_params=pltpu.CompilerParams(
            dimension_semantics=("parallel",),
            vmem_limit_bytes=int(vmem_budget),
        ),
    )(self_t, neigh_t, w_self, w_neigh)

    # Strip the E / N padding (zeros only).
    return out[:embed_dim, :n]


def build_neighbor_table(nodes, adj_lists, num_sample):
    """Deterministic stand-in for MeanAggregator's sampling + mask build.

    # TODO(synk): torch MeanAggregator uses random.sample; here we
    # deterministically take the first `num_sample` (sorted) neighbors.
    Returns a padded neighbor-id table and per-slot mean coefficients
    (1/count for valid slots, 0 for padding) -> equivalent to the row-normalized
    dense mask but O(N * num_sample) instead of O(N * num_nodes).
    """
    n = len(nodes)
    ids = np.zeros((n, num_sample), dtype=np.int32)
    coef = np.zeros((n, num_sample), dtype=np.float32)
    for i, node in enumerate(nodes):
        neighs = sorted(adj_lists[int(node)])[:num_sample]
        cnt = max(len(neighs), 1)
        for j, nb in enumerate(neighs):
            ids[i, j] = nb
            coef[i, j] = 1.0 / cnt
    return jnp.asarray(ids), jnp.asarray(coef)


if __name__ == "__main__":
    # Small, deterministic problem.
    num_nodes = 64
    feat_dim = 16
    embed_dim = 32
    num_sample = 10
    batch = 8

    key = jax.random.PRNGKey(0)
    k_feat, k_w = jax.random.split(key)

    # Feature embedding table (nn.Embedding weight equivalent).
    features = jax.random.normal(k_feat, (num_nodes, feat_dim), dtype=jnp.float32)

    # Xavier-uniform init of Encoder.weight [embed_dim, 2*feat_dim].
    fan_in, fan_out = 2 * feat_dim, embed_dim
    bound = float(np.sqrt(6.0 / (fan_in + fan_out)))
    weight = jax.random.uniform(k_w, (embed_dim, 2 * feat_dim),
                                minval=-bound, maxval=bound, dtype=jnp.float32)

    # Deterministic adjacency lists: node i -> {i+1, ..., i+5} mod num_nodes.
    adj_lists = {i: {(i + d) % num_nodes for d in range(1, 6)}
                 for i in range(num_nodes)}

    nodes_py = list(range(batch))
    nodes = jnp.asarray(nodes_py, dtype=jnp.int32)
    neigh_ids, neigh_coef = build_neighbor_table(nodes_py, adj_lists, num_sample)

    out = encoder_forward(features, weight, nodes, neigh_ids, neigh_coef)
    out = jax.block_until_ready(out)

    # Reference check (dense-mask formulation of the same math), applying the
    # same bf16 rounding to the matmul inputs as the kernel path (f32 accum).
    mask = np.zeros((batch, num_nodes), dtype=np.float32)
    for i, node in enumerate(nodes_py):
        neighs = sorted(adj_lists[int(node)])[:num_sample]
        for nb in neighs:
            mask[i, nb] = 1.0
        mask[i] /= max(len(neighs), 1)
    neigh_ref = jnp.asarray(mask) @ features                       # [N, D] f32
    self_ref = features[nodes]                                     # [N, D] f32
    cd = jnp.bfloat16
    combined = jnp.concatenate(
        [self_ref.astype(cd), neigh_ref.astype(cd)], axis=1).astype(jnp.float32)
    w_ref = weight.astype(cd).astype(jnp.float32)
    ref = jnp.maximum(w_ref @ combined.T, 0.0)                     # [E, N]

    assert out.shape == (embed_dim, batch)
    np.testing.assert_allclose(np.asarray(out), np.asarray(ref), rtol=2e-2, atol=2e-2)

    print("KERNEL_OK")
</pallas_src>

<mosaic_0001>
module attributes {stable_mosaic.version = 11 : i64} {
  func.func @encoder_kernel(%arg0: i32, %arg1: memref<16x128xbf16, #tpu.memory_space<vmem>>, %arg2: memref<16x128xbf16, #tpu.memory_space<vmem>>, %arg3: memref<32x16xbf16, #tpu.memory_space<vmem>>, %arg4: memref<32x16xbf16, #tpu.memory_space<vmem>>, %arg5: memref<32x128xf32, #tpu.memory_space<vmem>>) attributes {dimension_semantics = [#tpu.dimension_semantics<parallel>], iteration_bounds = array<i64: 1>, scalar_prefetch = 0 : i64, scratch_operands = 0 : i64, tpu.core_type = #tpu.core_type<tc>, window_params = [{transform_indices = @transform_0, window_bounds = array<i64: 16, 128>}, {transform_indices = @transform_1, window_bounds = array<i64: 16, 128>}, {pipeline_mode = #tpu.pipeline_mode<synchronous>, transform_indices = @transform_2, window_bounds = array<i64: 32, 16>}, {pipeline_mode = #tpu.pipeline_mode<synchronous>, transform_indices = @transform_3, window_bounds = array<i64: 32, 16>}, {transform_indices = @transform_4, window_bounds = array<i64: 32, 128>}]} {
    %c0 = arith.constant 0 : index
    %c0_0 = arith.constant 0 : index
    %0 = vector.load %arg3[%c0, %c0_0] : memref<32x16xbf16, #tpu.memory_space<vmem>>, vector<32x16xbf16>
    %c0_1 = arith.constant 0 : index
    %c0_2 = arith.constant 0 : index
    %1 = vector.load %arg1[%c0_1, %c0_2] : memref<16x128xbf16, #tpu.memory_space<vmem>>, vector<16x128xbf16>
    %cst = arith.constant dense<0.000000e+00> : vector<32x128xf32>
    %2 = tpu.matmul %0, %1, %cst {dimension_numbers = #tpu.dot_dimension_numbers<[1], [0], [0], [1], [0, 0, 1, 1], [], []>} : vector<32x16xbf16>, vector<16x128xbf16>, vector<32x128xf32> -> vector<32x128xf32>
    %c0_3 = arith.constant 0 : index
    %c0_4 = arith.constant 0 : index
    %3 = vector.load %arg4[%c0_3, %c0_4] : memref<32x16xbf16, #tpu.memory_space<vmem>>, vector<32x16xbf16>
    %c0_5 = arith.constant 0 : index
    %c0_6 = arith.constant 0 : index
    %4 = vector.load %arg2[%c0_5, %c0_6] : memref<16x128xbf16, #tpu.memory_space<vmem>>, vector<16x128xbf16>
    %cst_7 = arith.constant dense<0.000000e+00> : vector<32x128xf32>
    %5 = tpu.matmul %3, %4, %cst_7 {dimension_numbers = #tpu.dot_dimension_numbers<[1], [0], [0], [1], [0, 0, 1, 1], [], []>} : vector<32x16xbf16>, vector<16x128xbf16>, vector<32x128xf32> -> vector<32x128xf32>
    %6 = arith.addf %2, %5 : vector<32x128xf32>
    %cst_8 = arith.constant 0.000000e+00 : f32
    %7 = vector.broadcast %cst_8 : f32 to vector<32x128xf32>
    %8 = arith.maximumf %6, %7 : vector<32x128xf32>
    %c0_9 = arith.constant 0 : index
    %c0_10 = arith.constant 0 : index
    %9 = vector.load %arg5[%c0_9, %c0_10] : memref<32x128xf32, #tpu.memory_space<vmem>>, vector<32x128xf32>
    tpu.vector_store %arg5[%c0_9, %c0_10], %8 {strides = array<i32>} : memref<32x128xf32, #tpu.memory_space<vmem>>, vector<32x128xf32>,
    return
  }
  func.func @transform_0(%arg0: i32) -> (i32, i32) {
    %c0_i32 = arith.constant 0 : i32
    %c0_i32_0 = arith.constant 0 : i32
    return %c0_i32, %arg0 : i32, i32
  }
  func.func @transform_1(%arg0: i32) -> (i32, i32) {
    %c0_i32 = arith.constant 0 : i32
    %c0_i32_0 = arith.constant 0 : i32
    return %c0_i32, %arg0 : i32, i32
  }
  func.func @transform_2(%arg0: i32) -> (i32, i32) {
    %c0_i32 = arith.constant 0 : i32
    %c0_i32_0 = arith.constant 0 : i32
    %c0_i32_1 = arith.constant 0 : i32
    return %c0_i32, %c0_i32_0 : i32, i32
  }
  func.func @transform_3(%arg0: i32) -> (i32, i32) {
    %c0_i32 = arith.constant 0 : i32
    %c0_i32_0 = arith.constant 0 : i32
    %c0_i32_1 = arith.constant 0 : i32
    return %c0_i32, %c0_i32_0 : i32, i32
  }
  func.func @transform_4(%arg0: i32) -> (i32, i32) {
    %c0_i32 = arith.constant 0 : i32
    %c0_i32_0 = arith.constant 0 : i32
    return %c0_i32, %arg0 : i32, i32
  }
}

</mosaic_0001>

<llo_original>
// kernel: tpu_custom_call.1
$region0: #{tpu_custom_call.1}
  #allocation0 [shape = 'u32[]', space=smem, size = 0x4, offset = 0x4, fixed_abs, tag = 'smem constant byte address 0x4 - core index']
  #allocation1 [shape = 'u32[144,128]{1,0:T(1,128)}', space=vmem, size = 0x12000, scoped, tag = 'internal scratch']
  %s0 = inlined_call_operand.vmem [shape: bf16[16,128], index: 0, kind: input, shape index: {}]
  %s1 = inlined_call_operand.vmem [shape: bf16[16,128], index: 1, kind: input, shape index: {}]
  %s2 = inlined_call_operand.vmem [shape: bf16[32,16], index: 2, kind: input, shape index: {}]
  %s3 = inlined_call_operand.vmem [shape: bf16[32,16], index: 3, kind: input, shape index: {}]
  %s4 = inlined_call_operand.hbm [shape: f32[32,128], index: 4, kind: output, shape index: {}]
  %s5 = sld [smem:[#allocation0]]
  $region26: #{tpu_custom_call.1} parent=0
    _
  %s7 = ssub.s32 1, %s5
  %s8 = scalar_select 0, %s7, %s5
  $region1: #{tpu_custom_call.1} parent=0
    #allocation2 [shape = 'u8[16384]{0}', space=vmem, size = 0x4000, scoped, tag = 'output window, operand 0, single buffered']
    #allocation3 [shape = 's32[1]{0}', space=sflag, size = 0x4, scoped, tag = 'scoped memory for tpu_custom_call.1']
    %9 = vsyncpa [#allocation3], 0
    // Predicated region
    $region2: #{tpu_custom_call.1} parent=1 // pred_check
      _
    $region3: #{tpu_custom_call.1} parent=1 // pred_check_branch
      %11 = sbr.rel (0) target = $region5
    $region4: #{tpu_custom_call.1} parent=1 // pred_region
      _
    $region5: #{tpu_custom_call.1} parent=1 // pred_fallthru
      _
    // Predicated region
    $region6: #{tpu_custom_call.1} parent=1 // pred_check
      _
    $region7: #{tpu_custom_call.1} parent=1 // pred_check_branch
      %13 = sbr.rel (0) target = $region9
    $region8: #{tpu_custom_call.1} parent=1 // pred_region
      _
    $region9: #{tpu_custom_call.1} parent=1 // pred_fallthru
      _
    // Predicated region
    $region10: #{tpu_custom_call.1} parent=1 // pred_check
      _
    $region11: #{tpu_custom_call.1} parent=1 // pred_check_branch
      %15 = sbr.rel (0) target = $region13
    $region12: #{tpu_custom_call.1} parent=1 // pred_region
      _
    $region13: #{tpu_custom_call.1} parent=1 // pred_fallthru
      _
    // Predicated region
    $region14: #{tpu_custom_call.1} parent=1 // pred_check
      _
    $region15: #{tpu_custom_call.1} parent=1 // pred_check_branch
      %17 = sbr.rel (0) target = $region17
    $region16: #{tpu_custom_call.1} parent=1 // pred_region
      _
    $region17: #{tpu_custom_call.1} parent=1 // pred_fallthru
      _
    %v19 = vld [vmem:[%s2] sm:$0xf]
    %v20 = vld [vmem:[%s2 + $0x4] sm:$0xf]
    %v21 = vld [vmem:[%s2 + $0x8] sm:$0xf]
    %v22 = vld [vmem:[%s2 + $0xc] sm:$0xf]
    %v23 = vld [vmem:[%s0] sm:$0xf]
    %v24 = vld [vmem:[%s0 + $0x4] sm:$0xf]
    %v25 = vld [vmem:[%s3] sm:$0xf]
    %v26 = vld [vmem:[%s3 + $0x4] sm:$0xf]
    %v27 = vld [vmem:[%s3 + $0x8] sm:$0xf]
    %v28 = vld [vmem:[%s3 + $0xc] sm:$0xf]
    %v29 = vld [vmem:[%s1] sm:$0xf]
    %v30 = vld [vmem:[%s1 + $0x4] sm:$0xf]
    %v35 = vunpack.c.l.b16 %v25
    %v36 = vunpack.c.l.b16 %v26
    %v37 = vunpack.c.l.b16 %v27
    %v38 = vunpack.c.l.b16 %v28
    %v39 = vpack.c.b16 %v36, %v35
    %v40 = vpack.c.b16 %v38, %v37
    %v43 = vunpack.c.l.b16 %v29
    %v44 = vunpack.c.l.b16 %v30
    %v45 = vpack.c.b16 %v44, %v43
    %vm47 = vcmask 130048
    %v49 = vsel %vm47, %v39, 0
    %v52 = vsel %vm47, %v40, 0
    %54 = vmatprep.subr.bf16.mxu0 0
    %55 = vmatpush1.bf16.msra.mxu0 %v45
    %56 = vmatprep.subr.bf16.mxu0 0
    %57 = vmatpush1.bf16.msra.mxu0 0
    %58 = vmatprep.subr.bf16.mxu0 0
    %59 = vmatpush1.bf16.msra.mxu0 0
    %60 = vmatprep.subr.bf16.mxu0 0
    %61 = vmatpush1.bf16.msra.mxu0 0
    %62 = vmatprep.subr.bf16.mxu0 0
    %63 = vmatpush1.bf16.msra.mxu0 0
    %64 = vmatprep.subr.bf16.mxu0 0
    %65 = vmatpush1.bf16.msra.mxu0 0
    %66 = vmatprep.subr.bf16.mxu0 0
    %67 = vmatpush1.bf16.msra.mxu0 0
    %68 = vmatprep.subr.bf16.mxu0 0
    %69 = vmatpush1.bf16.msra.mxu0 0
    %70 = vmatprep.subr.bf16.mxu0 0
    %71 = vmatpush1.bf16.msra.mxu0 0
    %72 = vmatprep.subr.bf16.mxu0 0
    %73 = vmatpush1.bf16.msra.mxu0 0
    %74 = vmatprep.subr.bf16.mxu0 0
    %75 = vmatpush1.bf16.msra.mxu0 0
    %76 = vmatprep.subr.bf16.mxu0 0
    %77 = vmatpush1.bf16.msra.mxu0 0
    %78 = vmatprep.subr.bf16.mxu0 0
    %79 = vmatpush1.bf16.msra.mxu0 0
    %80 = vmatprep.subr.bf16.mxu0 0
    %81 = vmatpush1.bf16.msra.mxu0 0
    %82 = vmatprep.subr.bf16.mxu0 0
    %83 = vmatpush1.bf16.msra.mxu0 0
    %84 = vmatprep.subr.bf16.mxu0 0
    %85 = vmatpush1.bf16.msra.mxu0 0
    %86 = vmatprep.mubr.bf16.mxu0 0
    %87 = vmatmul.mubr.bf16.gmra.mrb[0].mxu0 %v49
    %v88 = vpop.f32.mrb[0].mxu0
    %v89 = vadd.f32 0.0, %v88
    %v90 = vpop.f32.mrb[0].mxu0
    %v91 = vpop.f32.mrb[0].mxu0
    %v92 = vadd.f32 0.0, %v91
    %v93 = vpop.f32.mrb[0].mxu0
    %94 = vmatprep.mubr.bf16.mxu0 0
    %95 = vmatmul.mubr.bf16.gmra.mrb[0].mxu0 %v52
    %v96 = vpop.f32.mrb[0].mxu0
    %v97 = vadd.f32 0.0, %v96
    %v98 = vpop.f32.mrb[0].mxu0
    %v99 = vpop.f32.mrb[0].mxu0
    %v100 = vadd.f32 0.0, %v99
    %v101 = vpop.f32.mrb[0].mxu0
    %102 = vdwg.mxu0
    %v107 = vunpack.c.l.b16 %v19
    %v108 = vunpack.c.l.b16 %v20
    %v109 = vunpack.c.l.b16 %v21
    %v110 = vunpack.c.l.b16 %v22
    %v111 = vpack.c.b16 %v108, %v107
    %v112 = vpack.c.b16 %v110, %v109
    %v115 = vunpack.c.l.b16 %v23
    %v116 = vunpack.c.l.b16 %v24
    %v117 = vpack.c.b16 %v116, %v115
    %v120 = vsel %vm47, %v111, 0
    %v123 = vsel %vm47, %v112, 0
    %125 = vmatprep.subr.bf16.mxu0 0
    %126 = vmatpush1.bf16.msra.mxu0 %v117
    %127 = vmatprep.subr.bf16.mxu0 0
    %128 = vmatpush1.bf16.msra.mxu0 0
    %129 = vmatprep.subr.bf16.mxu0 0
    %130 = vmatpush1.bf16.msra.mxu0 0
    %131 = vmatprep.subr.bf16.mxu0 0
    %132 = vmatpush1.bf16.msra.mxu0 0
    %133 = vmatprep.subr.bf16.mxu0 0
    %134 = vmatpush1.bf16.msra.mxu0 0
    %135 = vmatprep.subr.bf16.mxu0 0
    %136 = vmatpush1.bf16.msra.mxu0 0
    %137 = vmatprep.subr.bf16.mxu0 0
    %138 = vmatpush1.bf16.msra.mxu0 0
    %139 = vmatprep.subr.bf16.mxu0 0
    %140 = vmatpush1.bf16.msra.mxu0 0
    %141 = vmatprep.subr.bf16.mxu0 0
    %142 = vmatpush1.bf16.msra.mxu0 0
    %143 = vmatprep.subr.bf16.mxu0 0
    %144 = vmatpush1.bf16.msra.mxu0 0
    %145 = vmatprep.subr.bf16.mxu0 0
    %146 = vmatpush1.bf16.msra.mxu0 0
    %147 = vmatprep.subr.bf16.mxu0 0
    %148 = vmatpush1.bf16.msra.mxu0 0
    %149 = vmatprep.subr.bf16.mxu0 0
    %150 = vmatpush1.bf16.msra.mxu0 0
    %151 = vmatprep.subr.bf16.mxu0 0
    %152 = vmatpush1.bf16.msra.mxu0 0
    %153 = vmatprep.subr.bf16.mxu0 0
    %154 = vmatpush1.bf16.msra.mxu0 0
    %155 = vmatprep.subr.bf16.mxu0 0
    %156 = vmatpush1.bf16.msra.mxu0 0
    %157 = vmatprep.mubr.bf16.mxu0 0
    %158 = vmatmul.mubr.bf16.gmra.mrb[0].mxu0 %v120
    %v159 = vpop.f32.mrb[0].mxu0
    %v160 = vadd.f32 %v89, %v159
    %v161 = vpop.f32.mrb[0].mxu0
    %v162 = vpop.f32.mrb[0].mxu0
    %v163 = vadd.f32 %v92, %v162
    %v164 = vpop.f32.mrb[0].mxu0
    %165 = vmatprep.mubr.bf16.mxu0 0
    %166 = vmatmul.mubr.bf16.gmra.mrb[0].mxu0 %v123
    %v167 = vpop.f32.mrb[0].mxu0
    %v168 = vadd.f32 %v97, %v167
    %v169 = vpop.f32.mrb[0].mxu0
    %v170 = vpop.f32.mrb[0].mxu0
    %v171 = vadd.f32 %v100, %v170
    %v172 = vpop.f32.mrb[0].mxu0
    %173 = vdwg.mxu0
    %v174 = vmax.f32 %v160, 0.0
    %v175 = vmax.f32 %v163, 0.0
    %v176 = vmax.f32 %v168, 0.0
    %v177 = vmax.f32 %v171, 0.0
    %178 = vst [vmem:[#allocation2] sm:$0xff] %v174
    %179 = vst [vmem:[#allocation2 + $0x8] sm:$0xff] %v175
    %180 = vst [vmem:[#allocation2 + $0x10] sm:$0xff] %v176
    %181 = vst [vmem:[#allocation2 + $0x18] sm:$0xff] %v177
    // Predicated region
    $region18: #{tpu_custom_call.1} parent=1 // pred_check
      _
    $region19: #{tpu_custom_call.1} parent=1 // pred_check_branch
      %183 = sbr.rel (0) target = $region21
    $region20: #{tpu_custom_call.1} parent=1 // pred_region
      %s185 = ssub.s32 512, 512
      %186 = vsyncadd [#allocation3], %s185
      %s187 = sshll.u32 [#allocation2], 4
      %s188 = int_to_ptr.vmem [resolvable:$true] %s187
      %193 = dma.vmem_to_hbm [thread:$0]  %s188, 512, %s4, [#allocation3], 128, 128, 8
    $region21: #{tpu_custom_call.1} parent=1 // pred_fallthru
      _
    // Predicated region
    $region22: #{tpu_custom_call.1} parent=1 // pred_check
      _
    $region23: #{tpu_custom_call.1} parent=1 // pred_check_branch
      %195 = sbr.rel (0) target = $region25
    $region24: #{tpu_custom_call.1} parent=1 // pred_region
      %196 = dma.done [#allocation3], 512
    $region25: #{tpu_custom_call.1} parent=1 // pred_fallthru
      _
    %197 = vsyncpa [#allocation3], 1

</llo_original>
